<compile_context>
chip_gen: v5e
topology: v5e:2x2
jax: 0.10.0
libtpu: 0.0.40
codegen_flags: <defaults>
</compile_context>

<pallas_src>
import math

import jax
import jax.numpy as jnp
from jax.experimental import pallas as pl
from jax.experimental.pallas import tpu as pltpu

LAYER_NORM_EPS = 1e-12
NEG_INF = -1e9
VMEM_BUDGET = 48 * 1024 * 1024        # v7x-safe scoped-VMEM budget


def _round_up(x: int, m: int) -> int:
    return ((x + m - 1) // m) * m


def _row_tiling(m: int, row_tile: int = 512):
    """Row tile covering as many rows as fit (whole sequence when possible); when a
    single tile would cover everything and there are >=16 rows, split into exactly two
    'parallel' tiles so both of v7x's TensorCores get work."""
    mp8 = _round_up(m, 8)
    tm = min(_round_up(row_tile, 8), mp8)
    if mp8 // tm < 2 and mp8 >= 16:
        tm = _round_up((mp8 + 1) // 2, 8)
    mp = _round_up(mp8, tm)
    return tm, mp


def _compiler_params(n_parallel_axes: int):
    return pltpu.CompilerParams(
        dimension_semantics=("parallel",) * n_parallel_axes,
        vmem_limit_bytes=VMEM_BUDGET,
    )


# ----------------------------------------------------------------------------------
# Kernel 1: plain dense  y = x @ W + b   (Q / K / V projections)
# ----------------------------------------------------------------------------------
def _dense_kernel(x_ref, w_ref, b_ref, o_ref):
    y = jnp.dot(x_ref[...], w_ref[...], preferred_element_type=jnp.float32)
    o_ref[...] = (y + b_ref[...]).astype(o_ref.dtype)


def _dense(x2d, w, b, *, row_tile=512):
    M, K = x2d.shape
    N = w.shape[1]
    tm, mp = _row_tiling(M, row_tile)
    xb = jnp.pad(x2d, ((0, mp - M), (0, 0))).astype(jnp.bfloat16)   # bf16 MXU stream
    out = pl.pallas_call(
        _dense_kernel,
        out_shape=jax.ShapeDtypeStruct((mp, N), jnp.float32),
        grid_spec=pltpu.PrefetchScalarGridSpec(
            num_scalar_prefetch=0,
            grid=(mp // tm,),
            in_specs=[
                pl.BlockSpec((tm, K), lambda i: (i, 0)),
                pl.BlockSpec((K, N), lambda i: (0, 0)),
                pl.BlockSpec((1, N), lambda i: (0, 0)),
            ],
            out_specs=pl.BlockSpec((tm, N), lambda i: (i, 0)),
        ),
        compiler_params=_compiler_params(1),
    )(xb, w.astype(jnp.bfloat16), b.reshape(1, N).astype(jnp.float32))
    return out[:M]


# ----------------------------------------------------------------------------------
# Kernel 2: fused scaled-dot-product attention per (batch, head)
# ----------------------------------------------------------------------------------
def _make_attn_kernel(scale):
    def kernel(q_ref, k_ref, v_ref, m_ref, o_ref):
        # q: (1, Sq, d) bf16, k/v: (1, Sk, d) bf16, m: (1, 1, Sk) additive f32 mask.
        s = jnp.einsum("bqd,bkd->bqk", q_ref[...], k_ref[...],
                       preferred_element_type=jnp.float32) * scale
        s = s + m_ref[...]                                 # broadcast over queries
        s_max = jnp.max(s, axis=-1, keepdims=True)
        p = jnp.exp(s - s_max)
        p = p / jnp.sum(p, axis=-1, keepdims=True)         # f32 softmax
        o_ref[...] = jnp.einsum("bqk,bkd->bqd", p.astype(v_ref.dtype), v_ref[...],
                                preferred_element_type=jnp.float32).astype(o_ref.dtype)
    return kernel


def _mha_core(q, k, v, add_mask, *, n_heads, scale):
    BH, Sqp, d = q.shape
    Skp = k.shape[1]
    return pl.pallas_call(
        _make_attn_kernel(scale),
        out_shape=jax.ShapeDtypeStruct((BH, Sqp, d), jnp.float32),
        grid_spec=pltpu.PrefetchScalarGridSpec(
            num_scalar_prefetch=0,
            grid=(BH,),
            in_specs=[
                pl.BlockSpec((1, Sqp, d), lambda i: (i, 0, 0)),
                pl.BlockSpec((1, Skp, d), lambda i: (i, 0, 0)),
                pl.BlockSpec((1, Skp, d), lambda i: (i, 0, 0)),
                pl.BlockSpec((1, 1, Skp), lambda i: (i // n_heads, 0, 0)),
            ],
            out_specs=pl.BlockSpec((1, Sqp, d), lambda i: (i, 0, 0)),
        ),
        compiler_params=_compiler_params(1),
    )(q, k, v, add_mask)


# ----------------------------------------------------------------------------------
# Kernel 3: BertSelfOutput  y = LayerNorm(x @ W + b + residual)   (fused)
# ----------------------------------------------------------------------------------
def _dense_res_ln_kernel(x_ref, w_ref, b_ref, r_ref, g_ref, bt_ref, o_ref):
    y = jnp.dot(x_ref[...].astype(jnp.bfloat16), w_ref[...],
                preferred_element_type=jnp.float32)
    y = y + b_ref[...] + r_ref[...]                         # exact f32 residual
    mu = jnp.mean(y, axis=-1, keepdims=True)
    var = jnp.mean(jnp.square(y - mu), axis=-1, keepdims=True)
    y = (y - mu) * jax.lax.rsqrt(var + LAYER_NORM_EPS)
    o_ref[...] = (y * g_ref[...] + bt_ref[...]).astype(o_ref.dtype)


def _dense_res_ln(x2d, w, b, res2d, gamma, beta, *, row_tile=512):
    M, K = x2d.shape
    N = w.shape[1]
    tm, mp = _row_tiling(M, row_tile)
    pad = ((0, mp - M), (0, 0))
    out = pl.pallas_call(
        _dense_res_ln_kernel,
        out_shape=jax.ShapeDtypeStruct((mp, N), jnp.float32),
        grid_spec=pltpu.PrefetchScalarGridSpec(
            num_scalar_prefetch=0,
            grid=(mp // tm,),
            in_specs=[
                pl.BlockSpec((tm, K), lambda i: (i, 0)),
                pl.BlockSpec((K, N), lambda i: (0, 0)),
                pl.BlockSpec((1, N), lambda i: (0, 0)),
                pl.BlockSpec((tm, N), lambda i: (i, 0)),
                pl.BlockSpec((1, N), lambda i: (0, 0)),
                pl.BlockSpec((1, N), lambda i: (0, 0)),
            ],
            out_specs=pl.BlockSpec((tm, N), lambda i: (i, 0)),
        ),
        compiler_params=_compiler_params(1),
    )(jnp.pad(x2d, pad).astype(jnp.float32),
      w.astype(jnp.bfloat16),
      b.reshape(1, N).astype(jnp.float32),
      jnp.pad(res2d, pad).astype(jnp.float32),
      gamma.reshape(1, N).astype(jnp.float32),
      beta.reshape(1, N).astype(jnp.float32))
    return out[:M]


# ----------------------------------------------------------------------------------
# Kernel 4: BertIntermediate + BertOutput  (dense -> erf GELU -> dense -> +res -> LN)
# ----------------------------------------------------------------------------------
def _ffn_kernel(x_ref, w1_ref, b1_ref, w2_ref, b2_ref, g_ref, bt_ref, o_ref):
    xb = x_ref[...].astype(jnp.bfloat16)
    h = jnp.dot(xb, w1_ref[...], preferred_element_type=jnp.float32) + b1_ref[...]
    h = jax.nn.gelu(h, approximate=False)                   # exact erf GELU (torch)
    y = jnp.dot(h.astype(jnp.bfloat16), w2_ref[...], preferred_element_type=jnp.float32)
    y = y + b2_ref[...] + x_ref[...]                        # residual = attention_output
    mu = jnp.mean(y, axis=-1, keepdims=True)
    var = jnp.mean(jnp.square(y - mu), axis=-1, keepdims=True)
    y = (y - mu) * jax.lax.rsqrt(var + LAYER_NORM_EPS)
    o_ref[...] = (y * g_ref[...] + bt_ref[...]).astype(o_ref.dtype)


def _ffn(x2d, w1, b1, w2, b2, gamma, beta, *, row_tile=512):
    M, H = x2d.shape
    inter_dim = w1.shape[1]
    tm, mp = _row_tiling(M, row_tile)
    out = pl.pallas_call(
        _ffn_kernel,
        out_shape=jax.ShapeDtypeStruct((mp, H), jnp.float32),
        grid_spec=pltpu.PrefetchScalarGridSpec(
            num_scalar_prefetch=0,
            grid=(mp // tm,),
            in_specs=[
                pl.BlockSpec((tm, H), lambda i: (i, 0)),
                pl.BlockSpec((H, inter_dim), lambda i: (0, 0)),
                pl.BlockSpec((1, inter_dim), lambda i: (0, 0)),
                pl.BlockSpec((inter_dim, H), lambda i: (0, 0)),
                pl.BlockSpec((1, H), lambda i: (0, 0)),
                pl.BlockSpec((1, H), lambda i: (0, 0)),
                pl.BlockSpec((1, H), lambda i: (0, 0)),
            ],
            out_specs=pl.BlockSpec((tm, H), lambda i: (i, 0)),
        ),
        compiler_params=_compiler_params(1),
    )(jnp.pad(x2d, ((0, mp - M), (0, 0))).astype(jnp.float32),
      w1.astype(jnp.bfloat16), b1.reshape(1, inter_dim).astype(jnp.float32),
      w2.astype(jnp.bfloat16), b2.reshape(1, H).astype(jnp.float32),
      gamma.reshape(1, H).astype(jnp.float32), beta.reshape(1, H).astype(jnp.float32))
    return out[:M]


# ----------------------------------------------------------------------------------
# One BERT layer = BertAttention -> BertIntermediate -> BertOutput
# ----------------------------------------------------------------------------------
def _split_heads(x2d, B, S, n_heads, d, Sp):
    # (B*S, H) -> (B*n_heads, Sp, d), zero-padded along the sequence, bf16 MXU stream.
    x = x2d.reshape(B, S, n_heads, d).transpose(0, 2, 1, 3)
    x = jnp.pad(x, ((0, 0), (0, 0), (0, Sp - S), (0, 0)))
    return x.reshape(B * n_heads, Sp, d).astype(jnp.bfloat16)


def bert_layer(hidden, encoder, attention_mask, params, *, n_heads):
    """hidden: (B, Sq, H) queries; encoder: (B, Sk, H) keys/values;
    attention_mask: (B, Sk) 1/0 keep-mask over encoder positions (or None)."""
    B, Sq, H = hidden.shape
    Sk = encoder.shape[1]
    d = H // n_heads
    hid2d = hidden.reshape(B * Sq, H)
    enc2d = encoder.reshape(B * Sk, H)

    # ---- BertSelfAttention: Q/K/V projections ------------------------------------
    q = _dense(hid2d, params["wq"], params["bq"])
    k = _dense(enc2d, params["wk"], params["bk"])
    v = _dense(enc2d, params["wv"], params["bv"])

    # ---- fused softmax attention per (batch, head) --------------------------------
    Sqp = _round_up(Sq, 8)                  # sublane-aligned query tile
    Skp = _round_up(Sk, 128)                # lane-dense key/score axis
    qh = _split_heads(q, B, Sq, n_heads, d, Sqp)
    kh = _split_heads(k, B, Sk, n_heads, d, Skp)
    vh = _split_heads(v, B, Sk, n_heads, d, Skp)

    if attention_mask is None:
        attention_mask = jnp.ones((B, Sk), jnp.float32)
    add_mask = (1.0 - attention_mask.astype(jnp.float32)) * -10000.0   # BERT extended mask
    add_mask = jnp.pad(add_mask, ((0, 0), (0, Skp - Sk)), constant_values=NEG_INF)
    add_mask = add_mask.reshape(B, 1, Skp)

    ctx = _mha_core(qh, kh, vh, add_mask, n_heads=n_heads, scale=1.0 / math.sqrt(d))
    ctx = ctx[:, :Sq].reshape(B, n_heads, Sq, d).transpose(0, 2, 1, 3).reshape(B * Sq, H)

    # ---- BertSelfOutput (dense + dropout[identity] + residual + LayerNorm) --------
    attn_out = _dense_res_ln(ctx, params["wo"], params["bo"], hid2d,
                             params["ln1_gamma"], params["ln1_beta"])

    # ---- BertIntermediate + BertOutput (fused FFN, residual = attention output) ---
    layer_out = _ffn(attn_out, params["w1"], params["b1"], params["w2"], params["b2"],
                     params["ln2_gamma"], params["ln2_beta"])
    return layer_out.reshape(B, Sq, H)


class TableLayerSimplePallas:
    """Forward-pass port of TableLayerSimple (eval mode: dropout = identity)."""

    def __init__(self, params, n_heads):
        self.params = params
        self.n_heads = n_heads
        self.tok_hidden_states_cache = {}

    def __call__(self, tok_hidden_states=None, tok_attention_mask=None,
                 ent_hidden_states=None, ent_attention_mask=None, predict_id=None):
        tok_output, ent_output = None, None
        if tok_hidden_states is not None:
            tok_output = bert_layer(tok_hidden_states, tok_hidden_states,
                                    tok_attention_mask, self.params,
                                    n_heads=self.n_heads)
            self.tok_hidden_states_cache[predict_id] = tok_hidden_states
        else:
            tok_hidden_states = self.tok_hidden_states_cache[predict_id]
        if ent_hidden_states is not None:
            enc = jnp.concatenate([tok_hidden_states, ent_hidden_states], axis=1)
            ent_output = bert_layer(ent_hidden_states, enc, ent_attention_mask,
                                    self.params, n_heads=self.n_heads)
        # TODO(synk): attention-probability side outputs are not returned.
        return tok_output, ent_output


# ----------------------------------------------------------------------------------
# Pure-JAX f32 reference
# ----------------------------------------------------------------------------------
def _layer_norm_ref(x, g, b):
    mu = jnp.mean(x, axis=-1, keepdims=True)
    var = jnp.mean(jnp.square(x - mu), axis=-1, keepdims=True)
    return (x - mu) * jax.lax.rsqrt(var + LAYER_NORM_EPS) * g + b


def _bert_layer_ref(hidden, encoder, attention_mask, p, n_heads):
    B, Sq, H = hidden.shape
    Sk = encoder.shape[1]
    d = H // n_heads
    q = (hidden @ p["wq"] + p["bq"]).reshape(B, Sq, n_heads, d).transpose(0, 2, 1, 3)
    k = (encoder @ p["wk"] + p["bk"]).reshape(B, Sk, n_heads, d).transpose(0, 2, 1, 3)
    v = (encoder @ p["wv"] + p["bv"]).reshape(B, Sk, n_heads, d).transpose(0, 2, 1, 3)
    add_mask = (1.0 - attention_mask.astype(jnp.float32)) * -10000.0
    s = jnp.einsum("bhqd,bhkd->bhqk", q, k) / math.sqrt(d) + add_mask[:, None, None, :]
    a = jax.nn.softmax(s, axis=-1)
    ctx = jnp.einsum("bhqk,bhkd->bhqd", a, v).transpose(0, 2, 1, 3).reshape(B, Sq, H)
    attn_out = _layer_norm_ref(ctx @ p["wo"] + p["bo"] + hidden,
                               p["ln1_gamma"], p["ln1_beta"])
    inter = jax.nn.gelu(attn_out @ p["w1"] + p["b1"], approximate=False)
    return _layer_norm_ref(inter @ p["w2"] + p["b2"] + attn_out,
                           p["ln2_gamma"], p["ln2_beta"])


if __name__ == "__main__":
    B, S_TOK, S_ENT, H, N_HEADS, INTER = 2, 24, 16, 128, 2, 512

    key = jax.random.PRNGKey(0)
    ks = jax.random.split(key, 12)

    tok_hidden = jax.random.normal(ks[0], (B, S_TOK, H), jnp.float32)
    ent_hidden = jax.random.normal(ks[1], (B, S_ENT, H), jnp.float32)
    tok_mask = jnp.ones((B, S_TOK), jnp.float32).at[:, -4:].set(0.0)           # masked tok tail
    ent_mask = jnp.ones((B, S_TOK + S_ENT), jnp.float32).at[:, -3:].set(0.0)   # mask over concat

    def w(k_, shape, scale=0.05):
        return jax.random.normal(k_, shape, jnp.float32) * scale

    params = {
        "wq": w(ks[2], (H, H)), "bq": w(ks[3], (H,), 0.02),
        "wk": w(ks[4], (H, H)), "bk": w(ks[5], (H,), 0.02),
        "wv": w(ks[6], (H, H)), "bv": w(ks[7], (H,), 0.02),
        "wo": w(ks[8], (H, H)), "bo": jnp.zeros((H,), jnp.float32),
        "ln1_gamma": jnp.ones((H,), jnp.float32), "ln1_beta": jnp.zeros((H,), jnp.float32),
        "w1": w(ks[9], (H, INTER)), "b1": w(ks[10], (INTER,), 0.02),
        "w2": w(ks[11], (INTER, H)), "b2": jnp.zeros((H,), jnp.float32),
        "ln2_gamma": jnp.ones((H,), jnp.float32), "ln2_beta": jnp.zeros((H,), jnp.float32),
    }

    layer = TableLayerSimplePallas(params, N_HEADS)

    # Pass 1: token + entity streams (tok hidden states cached under predict_id=0).
    tok_out, ent_out = layer(tok_hidden_states=tok_hidden, tok_attention_mask=tok_mask,
                             ent_hidden_states=ent_hidden, ent_attention_mask=ent_mask,
                             predict_id=0)
    tok_out = jax.block_until_ready(tok_out)
    ent_out = jax.block_until_ready(ent_out)

    # Pass 2: entity-only call re-uses the cached tok hidden states (module semantics).
    tok_out2, ent_out2 = layer(ent_hidden_states=ent_hidden, ent_attention_mask=ent_mask,
                               predict_id=0)
    ent_out2 = jax.block_until_ready(ent_out2)

    tok_ref = _bert_layer_ref(tok_hidden, tok_hidden, tok_mask, params, N_HEADS)
    ent_ref = _bert_layer_ref(ent_hidden,
                              jnp.concatenate([tok_hidden, ent_hidden], axis=1),
                              ent_mask, params, N_HEADS)

    assert tok_out.shape == (B, S_TOK, H) and ent_out.shape == (B, S_ENT, H)
    assert tok_out2 is None
    # bf16 MXU operands vs. the f32 reference -> loosened tolerance.
    assert jnp.allclose(tok_out, tok_ref, atol=5e-2, rtol=5e-2), "tok mismatch vs reference"
    assert jnp.allclose(ent_out, ent_ref, atol=5e-2, rtol=5e-2), "ent mismatch vs reference"
    assert jnp.allclose(ent_out2, ent_out, atol=1e-6), "cached-tok path mismatch"

    print("KERNEL_OK")
</pallas_src>

<mosaic_0001>
module attributes {stable_mosaic.version = 11 : i64} {
  func.func @_dense_kernel(%arg0: i32, %arg1: memref<24x128xbf16, #tpu.memory_space<vmem>>, %arg2: memref<128x128xbf16, #tpu.memory_space<vmem>>, %arg3: memref<1x128xf32, #tpu.memory_space<vmem>>, %arg4: memref<24x128xf32, #tpu.memory_space<vmem>>) attributes {dimension_semantics = [#tpu.dimension_semantics<parallel>], iteration_bounds = array<i64: 2>, scalar_prefetch = 0 : i64, scratch_operands = 0 : i64, tpu.core_type = #tpu.core_type<tc>, window_params = [{transform_indices = @transform_0, window_bounds = array<i64: 24, 128>}, {pipeline_mode = #tpu.pipeline_mode<synchronous>, transform_indices = @transform_1, window_bounds = array<i64: 128, 128>}, {pipeline_mode = #tpu.pipeline_mode<synchronous>, transform_indices = @transform_2, window_bounds = array<i64: 1, 128>}, {transform_indices = @transform_3, window_bounds = array<i64: 24, 128>}]} {
    %c0 = arith.constant 0 : index
    %c0_0 = arith.constant 0 : index
    %0 = vector.load %arg1[%c0, %c0_0] : memref<24x128xbf16, #tpu.memory_space<vmem>>, vector<24x128xbf16>
    %c0_1 = arith.constant 0 : index
    %c0_2 = arith.constant 0 : index
    %1 = vector.load %arg2[%c0_1, %c0_2] : memref<128x128xbf16, #tpu.memory_space<vmem>>, vector<128x128xbf16>
    %cst = arith.constant dense<0.000000e+00> : vector<24x128xf32>
    %2 = tpu.matmul %0, %1, %cst {dimension_numbers = #tpu.dot_dimension_numbers<[1], [0], [0], [1], [0, 0, 1, 1], [], []>} : vector<24x128xbf16>, vector<128x128xbf16>, vector<24x128xf32> -> vector<24x128xf32>
    %c0_3 = arith.constant 0 : index
    %c0_4 = arith.constant 0 : index
    %3 = vector.load %arg3[%c0_3, %c0_4] : memref<1x128xf32, #tpu.memory_space<vmem>>, vector<1x128xf32>
    %4 = vector.broadcast %3 : vector<1x128xf32> to vector<24x128xf32>
    %5 = arith.addf %2, %4 : vector<24x128xf32>
    %c0_5 = arith.constant 0 : index
    %c0_6 = arith.constant 0 : index
    %6 = vector.load %arg4[%c0_5, %c0_6] : memref<24x128xf32, #tpu.memory_space<vmem>>, vector<24x128xf32>
    tpu.vector_store %arg4[%c0_5, %c0_6], %5 {strides = array<i32>} : memref<24x128xf32, #tpu.memory_space<vmem>>, vector<24x128xf32>,
    return
  }
  func.func @transform_0(%arg0: i32) -> (i32, i32) {
    %c0_i32 = arith.constant 0 : i32
    %c0_i32_0 = arith.constant 0 : i32
    return %arg0, %c0_i32 : i32, i32
  }
  func.func @transform_1(%arg0: i32) -> (i32, i32) {
    %c0_i32 = arith.constant 0 : i32
    %c0_i32_0 = arith.constant 0 : i32
    %c0_i32_1 = arith.constant 0 : i32
    return %c0_i32, %c0_i32_0 : i32, i32
  }
  func.func @transform_2(%arg0: i32) -> (i32, i32) {
    %c0_i32 = arith.constant 0 : i32
    %c0_i32_0 = arith.constant 0 : i32
    %c0_i32_1 = arith.constant 0 : i32
    return %c0_i32, %c0_i32_0 : i32, i32
  }
  func.func @transform_3(%arg0: i32) -> (i32, i32) {
    %c0_i32 = arith.constant 0 : i32
    %c0_i32_0 = arith.constant 0 : i32
    return %arg0, %c0_i32 : i32, i32
  }
}

</mosaic_0001>

<llo_original>
// kernel: tpu_custom_call.1
$region0: #{tpu_custom_call.1}
  #allocation0 [shape = 'u32[]', space=smem, size = 0x4, offset = 0x4, fixed_abs, tag = 'smem constant byte address 0x4 - core index']
  #allocation1 [shape = 'u32[72,128]{1,0:T(1,128)}', space=vmem, size = 0x9000, scoped, tag = 'internal scratch']
  %s0 = inlined_call_operand.hbm [shape: bf16[48,128], index: 0, kind: input, shape index: {}]
  %s1 = inlined_call_operand.hbm [shape: bf16[128,128], index: 1, kind: input, shape index: {}]
  %s2 = inlined_call_operand.vmem [shape: f32[1,128], index: 2, kind: input, shape index: {}]
  %s3 = inlined_call_operand.hbm [shape: f32[48,128], index: 3, kind: output, shape index: {}]
  %s4 = sld [smem:[#allocation0]]
  $region53: #{tpu_custom_call.1} parent=0
    _
  %s6 = ssub.s32 1, %s4
  %s7 = scalar_select 0, %s6, %s4
  $region1: #{tpu_custom_call.1} parent=0
    #allocation2 [shape = 'u8[12288]{0}', space=vmem, size = 0x3000, scoped, tag = 'input window, operand 0']
    #allocation3 [shape = 's32[2]{0}', space=sflag, size = 0x8, scoped, tag = 'scoped memory for tpu_custom_call.1']
    #allocation4 [shape = 's32[2]{0}', space=sflag, size = 0x8, scoped, tag = 'scoped memory for tpu_custom_call.1']
    #allocation5 [shape = 'u8[32768]{0}', space=vmem, size = 0x8000, scoped, tag = 'input window, operand 1, single buffered']
    #allocation6 [shape = 's32[1]{0}', space=sflag, size = 0x4, scoped, tag = 'scoped memory for tpu_custom_call.1']
    #allocation7 [shape = 'u8[24576]{0}', space=vmem, size = 0x6000, scoped, tag = 'output window, operand 0']
    %8 = vsyncpa [#allocation3], 0
    %s9 = scalar_lea.sflag [#allocation3], 1
    %10 = vsyncpa %s9, 0
    %11 = vsyncpa [#allocation6], 0
    %12 = vsyncpa [#allocation4], 0
    %s13 = scalar_lea.sflag [#allocation4], 1
    %14 = vsyncpa %s13, 0
    loop: start=0, step=1, limit=4
    $region2: #{tpu_custom_call.1} parent=1 // loop_pre_header
      _
    $region3: #{tpu_custom_call.1} parent=1 // loop_header
      %s16 = sphi 0, %s20
      %p17 = scmp.ge.s32.totalorder %s16, 4
      %s26 = sphi 0, %s28
      %s29 = sphi 0, %s26
      %s30 = sphi 0, %s29
      %s46 = sphi 0, %s30
      %s50 = sphi 0, %s50
      %s52 = sphi 0, %s50
      %s53 = sphi 0, %s52
      %s67 = sphi 0, %s53
      %s71 = sphi 0, %s71
      %s73 = sphi 0, %s71
      %s74 = sphi 0, %s73
      %s88 = sphi 0, %s74
      %s94 = sphi 0, %s96
      %s97 = sphi 0, %s94
      %s98 = sphi 0, %s97
      %s114 = sphi 0, %s98
    $region4: #{tpu_custom_call.1} parent=1 // loop_header_branch
      %19 = sbr.rel (%p17) target = $region8
    $region5: #{tpu_custom_call.1} parent=1 // loop_body
      %s21 = ssub.s32 %s16, 1
      %s22 = ssub.s32 %s16, 2
      %s23 = sadd.s32 %s16, 1
      %s24 = ssub.s32 %s16, %s23
      %p25 = scmp.eq.s32.totalorder %s24, 0
      %s27 = sadd.s32 %s26, 1
      %s28 = scalar_select %p25, %s26, %s27
      %p31 = pneg %p25
      %p32 = scmp.eq.s32.totalorder %s16, 1
      %p33 = por %p31, %p32
      %p34 = scmp.ne.s32.totalorder %s26, %s29
      %p35 = scmp.eq.s32.totalorder %s16, 0
      %p36 = por %p34, %p35
      %p37 = scmp.ne.s32.totalorder %s26, %s29
      %p38 = scmp.eq.s32.totalorder %s21, 1
      %p39 = por %p37, %p38
      %p40 = scmp.ne.s32.totalorder %s29, %s30
      %p41 = scmp.eq.s32.totalorder %s21, 0
      %p42 = por %p40, %p41
      %p43 = scmp.ne.s32.totalorder %s29, %s30
      %p44 = scmp.eq.s32.totalorder %s22, 1
      %p45 = por %p43, %p44
      %p47 = scmp.ne.s32.totalorder %s30, %s46
      %p48 = scmp.eq.s32.totalorder %s22, 0
      %p49 = por %p47, %p48
      %s51 = sadd.s32 %s50, 1
      %p54 = scmp.eq.s32.totalorder %s16, 1
      %p55 = scmp.ne.s32.totalorder %s50, %s52
      %p56 = scmp.eq.s32.totalorder %s16, 0
      %p57 = por %p55, %p56
      %p58 = scmp.ne.s32.totalorder %s50, %s52
      %p59 = scmp.eq.s32.totalorder %s21, 1
      %p60 = por %p58, %p59
      %p61 = scmp.ne.s32.totalorder %s52, %s53
      %p62 = scmp.eq.s32.totalorder %s21, 0
      %p63 = por %p61, %p62
      %p64 = scmp.ne.s32.totalorder %s52, %s53
      %p65 = scmp.eq.s32.totalorder %s22, 1
      %p66 = por %p64, %p65
      %p68 = scmp.ne.s32.totalorder %s53, %s67
      %p69 = scmp.eq.s32.totalorder %s22, 0
      %p70 = por %p68, %p69
      %s72 = sadd.s32 %s71, 1
      %p75 = scmp.eq.s32.totalorder %s16, 1
      %p76 = scmp.ne.s32.totalorder %s71, %s73
      %p77 = scmp.eq.s32.totalorder %s16, 0
      %p78 = por %p76, %p77
      %p79 = scmp.ne.s32.totalorder %s71, %s73
      %p80 = scmp.eq.s32.totalorder %s21, 1
      %p81 = por %p79, %p80
      %p82 = scmp.ne.s32.totalorder %s73, %s74
      %p83 = scmp.eq.s32.totalorder %s21, 0
      %p84 = por %p82, %p83
      %p85 = scmp.ne.s32.totalorder %s73, %s74
      %p86 = scmp.eq.s32.totalorder %s22, 1
      %p87 = por %p85, %p86
      %p89 = scmp.ne.s32.totalorder %s74, %s88
      %p90 = scmp.eq.s32.totalorder %s22, 0
      %p91 = por %p89, %p90
      %s92 = ssub.s32 %s16, %s23
      %p93 = scmp.eq.s32.totalorder %s92, 0
      %s95 = sadd.s32 %s94, 1
      %s96 = scalar_select %p93, %s94, %s95
      %p99 = pneg %p93
      %p100 = scmp.eq.s32.totalorder %s16, 1
      %p101 = por %p99, %p100
      %p102 = scmp.ne.s32.totalorder %s94, %s97
      %p103 = scmp.eq.s32.totalorder %s16, 0
      %p104 = por %p102, %p103
      %p105 = scmp.ne.s32.totalorder %s94, %s97
      %p106 = scmp.eq.s32.totalorder %s21, 1
      %p107 = por %p105, %p106
      %p108 = scmp.ne.s32.totalorder %s97, %s98
      %p109 = scmp.eq.s32.totalorder %s21, 0
      %p110 = por %p108, %p109
      %p111 = scmp.ne.s32.totalorder %s97, %s98
      %p112 = scmp.eq.s32.totalorder %s22, 1
      %p113 = por %p111, %p112
      %p115 = scmp.ne.s32.totalorder %s98, %s114
      %p116 = scmp.eq.s32.totalorder %s22, 0
      %p117 = por %p115, %p116
      %p118 = scmp.le.s32.totalorder 1, %s16
      %p119 = scmp.lt.s32.totalorder %s16, 3
      %p120 = pnand %p118, %p119
      %p121 = pneg %p120
      // Predicated region
      $region9: #{tpu_custom_call.1} parent=5 // pred_check
        _
      $region10: #{tpu_custom_call.1} parent=5 // pred_check_branch
        %123 = sbr.rel (%p120) target = $region12
      $region11: #{tpu_custom_call.1} parent=5 // pred_region
        %s124 = ssub.s32 %s16, 1
        // Predicated region
        $region13: #{tpu_custom_call.1} parent=11 // pred_check
          %p125 = pneg %p63
        $region14: #{tpu_custom_call.1} parent=11 // pred_check_branch
          %127 = sbr.rel (%p125) target = $region16
        $region15: #{tpu_custom_call.1} parent=11 // pred_region
          %129 = vsyncadd [#allocation6], 0
          %s130 = sshll.u32 %s1, 4
          %s131 = int_to_ptr.hbm [resolvable:$true] %s130
          %s132 = sshll.u32 [#allocation5], 4
          %s133 = int_to_ptr.vmem [resolvable:$true] %s132
          %138 = dma.hbm_to_vmem [thread:$0]  %s131, 1024, %s133, [#allocation6], 64, 64, 4
        $region16: #{tpu_custom_call.1} parent=11 // pred_fallthru
          _
        // Predicated region
        $region17: #{tpu_custom_call.1} parent=11 // pred_check
          %p139 = pneg %p84
        $region18: #{tpu_custom_call.1} parent=11 // pred_check_branch
          %141 = sbr.rel (%p139) target = $region20
        $region19: #{tpu_custom_call.1} parent=11 // pred_region
          _
        $region20: #{tpu_custom_call.1} parent=11 // pred_fallthru
          _
      $region12: #{tpu_custom_call.1} parent=5 // pred_fallthru
        _
      %p142 = scmp.lt.s32.totalorder %s16, 2
      // Predicated region
      $region21: #{tpu_custom_call.1} parent=5 // pred_check
        %p143 = pneg %p142
      $region22: #{tpu_custom_call.1} parent=5 // pred_check_branch
        %145 = sbr.rel (%p143) target = $region24
      $region23: #{tpu_custom_call.1} parent=5 // pred_region
        // Predicated region
        $region25: #{tpu_custom_call.1} parent=23 // pred_check
          %p146 = pneg %p36
        $region26: #{tpu_custom_call.1} parent=23 // pred_check_branch
          %148 = sbr.rel (%p146) target = $region28
        $region27: #{tpu_custom_call.1} parent=23 // pred_region
          %s149 = sand.u32 %s26, 1
          %s150 = scalar_lea.sflag [#allocation3], %s149
          %s151 = sand.u32 %s26, 1
          %s152 = smul.addr %s151, 12
          %s153 = scalar_lea.vmem [#allocation2], %s152
          %s154 = smul.u32 3, %s16
          %156 = vsyncadd %s150, 0
          %s157 = smul.addr %s154, 4
          %s158 = scalar_lea.hbm %s0, %s157
          %s159 = sshll.u32 %s158, 4
          %s160 = int_to_ptr.hbm [resolvable:$true] %s159
          %s161 = sshll.u32 %s153, 4
          %s162 = int_to_ptr.vmem [resolvable:$true] %s161
          %167 = dma.hbm_to_vmem [thread:$0]  %s160, 192, %s162, %s150, 64, 64, 4
        $region28: #{tpu_custom_call.1} parent=23 // pred_fallthru
          _
      $region24: #{tpu_custom_call.1} parent=5 // pred_fallthru
        _
      %p168 = scmp.le.s32.totalorder 1, %s16
      %p169 = scmp.lt.s32.totalorder %s16, 3
      %p170 = pnand %p168, %p169
      %p171 = pneg %p170
      // Predicated region
      $region29: #{tpu_custom_call.1} parent=5 // pred_check
        _
      $region30: #{tpu_custom_call.1} parent=5 // pred_check_branch
        %173 = sbr.rel (%p170) target = $region32
      $region31: #{tpu_custom_call.1} parent=5 // pred_region
        %s174 = ssub.s32 %s16, 1
        %s175 = sand.u32 %s29, 1
        %s176 = scalar_lea.sflag [#allocation3], %s175
        %s177 = sand.u32 %s29, 1
        %s178 = smul.addr %s177, 12
        %s179 = scalar_lea.vmem [#allocation2], %s178
        // Predicated region
        $region33: #{tpu_custom_call.1} parent=31 // pred_check
          %p180 = pneg %p42
        $region34: #{tpu_custom_call.1} parent=31 // pred_check_branch
          %182 = sbr.rel (%p180) target = $region36
        $region35: #{tpu_custom_call.1} parent=31 // pred_region
          %184 = dma.done %s176, 192
        $region36: #{tpu_custom_call.1} parent=31 // pred_fallthru
          _
        // Predicated region
        $region37: #{tpu_custom_call.1} parent=31 // pred_check
          %p185 = pneg %p63
        $region38: #{tpu_custom_call.1} parent=31 // pred_check_branch
          %187 = sbr.rel (%p185) target = $region40
        $region39: #{tpu_custom_call.1} parent=31 // pred_region
          %189 = dma.done [#allocation6], 1024
        $region40: #{tpu_custom_call.1} parent=31 // pred_fallthru
          _
        %s190 = sand.u32 %s29, 1
        %s191 = scalar_lea.sflag [#allocation3], %s190
        %s192 = sand.u32 %s29, 1
        %s193 = smul.addr %s192, 12
        %s194 = scalar_lea.vmem [#allocation2], %s193
        %p195 = pneg %p42
        %p196 = pneg %p39
        %p197 = pneg %p63
        %p198 = pneg %p60
        %p199 = pneg %p84
        %p200 = pneg %p81
        %p201 = pneg %p110
        %p202 = pneg %p107
        %s203 = sand.u32 %s97, 1
        %s204 = scalar_lea.sflag [#allocation4], %s203
        %s205 = sand.u32 %s97, 1
        %s206 = smul.addr %s205, 24
        %s207 = scalar_lea.vmem [#allocation7], %s206
        %s208 = smul.u32 3, %s21
        %s209 = smul.u32 3, %s21
        %v210 = vld [vmem:[%s179] sm:$0xf]
        %v211 = vld [vmem:[%s179 + $0x4] sm:$0xf]
        %v212 = vld [vmem:[%s179 + $0x8] sm:$0xf]
        %v213 = vld [vmem:[#allocation5] sm:$0xf]
        %v214 = vld [vmem:[#allocation5 + $0x4] sm:$0xf]
        %v215 = vld [vmem:[#allocation5 + $0x8] sm:$0xf]
        %v216 = vld [vmem:[#allocation5 + $0xc] sm:$0xf]
        %v217 = vld [vmem:[#allocation5 + $0x10] sm:$0xf]
        %v218 = vld [vmem:[#allocation5 + $0x14] sm:$0xf]
        %v219 = vld [vmem:[#allocation5 + $0x18] sm:$0xf]
        %v220 = vld [vmem:[#allocation5 + $0x1c] sm:$0xf]
        %v221 = vld [vmem:[#allocation5 + $0x20] sm:$0xf]
        %v222 = vld [vmem:[#allocation5 + $0x24] sm:$0xf]
        %v223 = vld [vmem:[#allocation5 + $0x28] sm:$0xf]
        %v224 = vld [vmem:[#allocation5 + $0x2c] sm:$0xf]
        %v225 = vld [vmem:[#allocation5 + $0x30] sm:$0xf]
        %v226 = vld [vmem:[#allocation5 + $0x34] sm:$0xf]
        %v227 = vld [vmem:[#allocation5 + $0x38] sm:$0xf]
        %v228 = vld [vmem:[#allocation5 + $0x3c] sm:$0xf]
        %v229 = vld [vmem:[%s2] sm:$0x1]
        %v231 = vperm.slane %v229, 0
        %v236 = vunpack.c.l.b16 %v210
        %v237 = vunpack.c.l.b16 %v211
        %v238 = vunpack.c.l.b16 %v212
        %v239 = vpack.c.b16 %v237, %v236
        %v240 = vpack.c.b16 %v238, %v238
        %v259 = vunpack.c.l.b16 %v213
        %v260 = vunpack.c.l.b16 %v214
        %v261 = vunpack.c.l.b16 %v215
        %v262 = vunpack.c.l.b16 %v216
        %v263 = vunpack.c.l.b16 %v217
        %v264 = vunpack.c.l.b16 %v218
        %v265 = vunpack.c.l.b16 %v219
        %v266 = vunpack.c.l.b16 %v220
        %v267 = vunpack.c.l.b16 %v221
        %v268 = vunpack.c.l.b16 %v222
        %v269 = vunpack.c.l.b16 %v223
        %v270 = vunpack.c.l.b16 %v224
        %v271 = vunpack.c.l.b16 %v225
        %v272 = vunpack.c.l.b16 %v226
        %v273 = vunpack.c.l.b16 %v227
        %v274 = vunpack.c.l.b16 %v228
        %v275 = vpack.c.b16 %v260, %v259
        %v276 = vpack.c.b16 %v262, %v261
        %v277 = vpack.c.b16 %v264, %v263
        %v278 = vpack.c.b16 %v266, %v265
        %v279 = vpack.c.b16 %v268, %v267
        %v280 = vpack.c.b16 %v270, %v269
        %v281 = vpack.c.b16 %v272, %v271
        %v282 = vpack.c.b16 %v274, %v273
        %291 = vmatpush.bf16.msra.mxu0 %v282
        %292 = vmatpush.bf16.msra.mxu0 %v281
        %293 = vmatpush.bf16.msra.mxu0 %v280
        %294 = vmatpush.bf16.msra.mxu0 %v279
        %295 = vmatpush.bf16.msra.mxu0 %v278
        %296 = vmatpush.bf16.msra.mxu0 %v277
        %297 = vmatpush.bf16.msra.mxu0 %v276
        %298 = vmatpush.bf16.msra.mxu0 %v275
        %299 = vmatmul.bf16.gmra.mxu0 %v239
        %v300 = vpop.f32.mrf.mxu0
        %v301 = vadd.f32 %v231, %v300
        %v302 = vpop.f32.mrf.mxu0
        %v303 = vadd.f32 %v231, %v302
        %304 = vmatmul.bf16.gmra.mxu0 %v240
        %v305 = vpop.f32.mrf.mxu0
        %v306 = vadd.f32 %v231, %v305
        %v307 = vpop.f32.mrf.mxu0
        %308 = vdwg.mxu0
        %309 = vst [vmem:[%s207] sm:$0xff] %v301
        %310 = vst [vmem:[%s207 + $0x8] sm:$0xff] %v303
        %311 = vst [vmem:[%s207 + $0x10] sm:$0xff] %v306
        %s312 = sand.u32 %s97, 1
        %s313 = scalar_lea.sflag [#allocation4], %s312
        %s314 = sand.u32 %s97, 1
        %s315 = smul.addr %s314, 24
        %s316 = scalar_lea.vmem [#allocation7], %s315
        // Predicated region
        $region41: #{tpu_custom_call.1} parent=31 // pred_check
          %p317 = pneg %p107
        $region42: #{tpu_custom_call.1} parent=31 // pred_check_branch
          %319 = sbr.rel (%p317) target = $region44
        $region43: #{tpu_custom_call.1} parent=31 // pred_region
          %s320 = smul.u32 3, %s21
          %322 = vsyncadd %s313, 0
          %s323 = smul.addr %s320, 8
          %s324 = scalar_lea.hbm %s3, %s323
          %s325 = sshll.u32 %s316, 4
          %s326 = int_to_ptr.vmem [resolvable:$true] %s325
          %s327 = sshll.u32 %s324, 4
          %s328 = int_to_ptr.hbm [resolvable:$true] %s327
          %333 = dma.vmem_to_hbm [thread:$0]  %s326, 384, %s328, %s313, 128, 128, 8
        $region44: #{tpu_custom_call.1} parent=31 // pred_fallthru
          _
      $region32: #{tpu_custom_call.1} parent=5 // pred_fallthru
        _
      %p334 = scmp.le.s32.totalorder 2, %s16
      // Predicated region
      $region45: #{tpu_custom_call.1} parent=5 // pred_check
        %p335 = pneg %p334
      $region46: #{tpu_custom_call.1} parent=5 // pred_check_branch
        %337 = sbr.rel (%p335) target = $region48
      $region47: #{tpu_custom_call.1} parent=5 // pred_region
        %s338 = ssub.s32 %s16, 2
        // Predicated region
        $region49: #{tpu_custom_call.1} parent=47 // pred_check
          %p339 = pneg %p113
        $region50: #{tpu_custom_call.1} parent=47 // pred_check_branch
          %341 = sbr.rel (%p339) target = $region52
        $region51: #{tpu_custom_call.1} parent=47 // pred_region
          %s342 = sand.u32 %s98, 1
          %s343 = scalar_lea.sflag [#allocation4], %s342
          %s344 = sand.u32 %s98, 1
          %s345 = smul.addr %s344, 24
          %s346 = scalar_lea.vmem [#allocation7], %s345
          %348 = dma.done %s343, 384
        $region52: #{tpu_custom_call.1} parent=47 // pred_fallthru
          _
      $region48: #{tpu_custom_call.1} parent=5 // pred_fallthru
        _
    $region6: #{tpu_custom_call.1} parent=1 // loop_footer
      %s20 = sadd.s32 1, %s16
    $region7: #{tpu_custom_call.1} parent=1 // loop_footer_branch
      %15 = sbr.rel target = $region3
    $region8: #{tpu_custom_call.1} parent=1 // loop_exit
      _
    %349 = vsyncpa [#allocation3], 1
    %s350 = scalar_lea.sflag [#allocation3], 1
    %351 = vsyncpa %s350, 1
    %352 = vsyncpa [#allocation6], 1
    %353 = vsyncpa [#allocation4], 1
    %s354 = scalar_lea.sflag [#allocation4], 1
    %355 = vsyncpa %s354, 1

</llo_original>
